<compile_context>
chip_gen: v7x
topology: tpu7x:2x2x1
jax: 0.10.0
libtpu: 0.0.40
codegen_flags: <defaults>
</compile_context>

<pallas_src>
import functools

import jax
import jax.numpy as jnp
from jax.experimental import pallas as pl
from jax.experimental.pallas import tpu as pltpu


# ----------------------------------------------------------------------------
# Activation functions (applied to a whole VMEM tile inside the kernel).
# Float math is done in f32 (the kernel upcasts low-precision inputs).
# ----------------------------------------------------------------------------
def _relu(x):
    return jnp.maximum(x, 0.0)


def _erf(x):
    # Abramowitz & Stegun 7.1.26 rational approximation, |error| <= 1.5e-7.
    # Uses only exp / mul / add (guaranteed Mosaic lowerings on all TPU gens).
    sgn = jnp.where(x >= 0, 1.0, -1.0).astype(x.dtype)
    ax = jnp.abs(x)
    t = 1.0 / (1.0 + 0.3275911 * ax)
    poly = ((((1.061405429 * t - 1.453152027) * t + 1.421413741) * t
             - 0.284496736) * t + 0.254829592) * t
    return sgn * (1.0 - poly * jnp.exp(-ax * ax))


def _gelu(x):
    # Exact (erf) GELU — matches torch.nn.functional.gelu's default.
    return 0.5 * x * (1.0 + _erf(x * 0.7071067811865476))


def _gelu_tanh(x):
    # tanh approximation == torch gelu(approximate='tanh').
    c = jnp.asarray(0.7978845608028654, x.dtype)  # sqrt(2/pi)
    return 0.5 * x * (1.0 + jnp.tanh(c * (x + 0.044715 * x * x * x)))


def _sigmoid(x):
    return pl.reciprocal(1.0 + jnp.exp(-x), approx=False)


# name -> (fn, flops/elem, transcendentals/elem)   (cost numbers are advisory)
_ACTIVATIONS = {
    "relu": (_relu, 1, 0),
    "gelu": (_gelu, 14, 1),
    "gelu_tanh": (_gelu_tanh, 10, 1),
    "sigmoid": (_sigmoid, 3, 1),
}


# ----------------------------------------------------------------------------
# Pallas kernel: elementwise activation on one VMEM tile.
# ----------------------------------------------------------------------------
def _activation_kernel(x_ref, o_ref, *, act_fn):
    x = x_ref[...]
    # Upcast low-precision floats: v5e's VPU/EUP have no native bf16 and the
    # kernel is HBM-bound, so f32 compute + cast-on-store is free and keeps
    # gelu/sigmoid inside a 1e-5-style tolerance.
    if jnp.issubdtype(x.dtype, jnp.floating) and x.dtype != jnp.float32:
        x = x.astype(jnp.float32)
    o_ref[...] = act_fn(x).astype(o_ref.dtype)


# ----------------------------------------------------------------------------
# Tiling helpers.
# ----------------------------------------------------------------------------
def _round_up(v, m):
    return ((v + m - 1) // m) * m


def _cdiv(a, b):
    return -(-a // b)


def _sublane(dtype):
    # Sublane packing multiple per dtype (f32:8, bf16:16, int8/fp8:32).
    return {4: 8, 2: 16, 1: 32}.get(jnp.dtype(dtype).itemsize, 8)


def _select_lane(n):
    """Largest lane-dense width that divides n (zero-copy path), else pad."""
    for lane in (512, 256, 128):
        if n % lane == 0:
            return lane, False
    return 512, True  # rare fallback: pad the tail (< 512 elements)


@functools.lru_cache(maxsize=None)
def _chip_budgets():
    """Returns (per_block_byte_budget, vmem_limit_bytes_or_None)."""
    kind = ""
    try:
        kind = jax.devices()[0].device_kind.lower()
    except Exception:
        pass
    vmem = None
    try:
        vmem = pltpu.get_tpu_info().vmem_capacity_bytes
    except Exception:
        pass
    if "v7" in kind or (vmem is not None and vmem <= 64 * 1024 * 1024):
        # v7x: 3.2 TB/s HBM -> bigger blocks amortize the ~0.35us step
        # overhead; 4 live buffers * 6 MiB = 24 MiB, request 32 MiB scoped.
        return 6 * 1024 * 1024, 32 * 1024 * 1024
    if "v5" in kind or "v4" in kind:
        # v5e default scoped VMEM is 16 MiB: keep double-buffered in+out small.
        return 2 * 1024 * 1024, None
    # v6e (32 MiB default scoped VMEM) and unknown chips.
    return 4 * 1024 * 1024, None


def _pick_block_rows(rows, sub, lane, itemsize):
    budget, _ = _chip_budgets()
    cap = max(sub, (budget // (lane * itemsize)) // sub * sub)
    if rows <= sub:
        # Single full-extent block (legal even when rows % 8 != 0).
        return rows
    # Prefer >= 4 grid steps so DMA/compute overlap and both v7x TensorCores
    # stream, but never below one sublane tile and never above the VMEM cap.
    quarter = _round_up(_cdiv(rows, 4), sub)
    return max(sub, min(cap, quarter))


# ----------------------------------------------------------------------------
# Wrapper: the Pallas equivalent of the `Activation` module.
# ----------------------------------------------------------------------------
def make_activation(activation_fn="relu", *, in_place=False):
    """Returns a callable equivalent to Activation(activation_fn).forward.

    `activation_fn` may be a string key ("relu"/"gelu"/"gelu_tanh"/"sigmoid")
    or an arbitrary JAX-traceable *elementwise* callable.  Activations with
    axis semantics (softmax, GLU, channel-wise ops) are out of scope because
    the input is flattened to a lane-dense 2-D slab.

    `in_place=True` adds input_output_aliases={0: 0}; only useful when the
    caller donates x (e.g. jit donate_argnums) — otherwise XLA inserts a copy.
    """
    if isinstance(activation_fn, str):
        act_fn, flops_per, trans_per = _ACTIVATIONS[activation_fn]
    else:
        act_fn, flops_per, trans_per = activation_fn, 4, 1

    kernel = functools.partial(_activation_kernel, act_fn=act_fn)

    def forward(x):
        orig_shape = x.shape
        dtype = x.dtype
        n = x.size
        if n == 0:
            return x
        itemsize = jnp.dtype(dtype).itemsize
        sub = _sublane(dtype)

        lane, needs_pad = _select_lane(n)
        rows = _cdiv(n, lane)
        padded_n = rows * lane

        x_flat = x.reshape(-1)
        if needs_pad:
            # Rare fallback (n not a multiple of 128): pad only the tail.
            x_flat = jnp.pad(x_flat, (0, padded_n - n))
        x2 = x_flat.reshape(rows, lane)  # zero-copy on the common path

        block_rows = _pick_block_rows(rows, sub, lane, itemsize)
        grid = _cdiv(rows, block_rows)  # partial last block is masked

        budget, vmem_limit = _chip_budgets()
        cp_kwargs = dict(dimension_semantics=("parallel",))
        if vmem_limit is not None:
            cp_kwargs["vmem_limit_bytes"] = vmem_limit

        out2 = pl.pallas_call(
            kernel,
            out_shape=jax.ShapeDtypeStruct((rows, lane), dtype),
            grid_spec=pltpu.PrefetchScalarGridSpec(
                num_scalar_prefetch=0,
                grid=(grid,),
                in_specs=[pl.BlockSpec((block_rows, lane), lambda i: (i, 0))],
                out_specs=pl.BlockSpec((block_rows, lane), lambda i: (i, 0)),
            ),
            compiler_params=pltpu.CompilerParams(**cp_kwargs),
            cost_estimate=pl.CostEstimate(
                flops=flops_per * n,
                transcendentals=trans_per * n,
                bytes_accessed=2 * n * itemsize,
            ),
            input_output_aliases=({0: 0} if in_place else {}),
        )(x2)

        out_flat = out2.reshape(-1)
        if needs_pad:
            out_flat = out_flat[:n]  # drop the tail pad (rare path only)
        return out_flat.reshape(orig_shape)

    return forward


if __name__ == "__main__":
    key = jax.random.PRNGKey(0)
    k0, k1, k2 = jax.random.split(key, 3)

    # Fast path: n = 2048 is a multiple of 512 (typical conv feature map).
    x = jax.random.normal(k0, (2, 4, 16, 16), dtype=jnp.float32)
    # Fallback path: n = 1938 is not a multiple of 128 (tail pad + slice).
    x_odd = jax.random.normal(k1, (2, 3, 17, 19), dtype=jnp.float32)

    ok = True
    checks = [
        ("relu", jax.nn.relu),
        ("gelu", lambda v: jax.nn.gelu(v, approximate=False)),      # torch default (erf)
        ("gelu_tanh", lambda v: jax.nn.gelu(v, approximate=True)),
        ("sigmoid", jax.nn.sigmoid),
    ]
    for name, ref_fn in checks:
        act = make_activation(name)
        for inp in (x, x_odd):
            out = jax.block_until_ready(act(inp))
            ref = ref_fn(inp)
            if out.shape != inp.shape or not jnp.allclose(out, ref, atol=1e-5, rtol=1e-5):
                ok = False
                print(f"MISMATCH for {name} shape {inp.shape}")

    # bf16 path: f32 compute inside the kernel keeps sigmoid accurate.
    xb = jax.random.normal(k2, (4, 8, 32, 32), dtype=jnp.bfloat16)
    outb = jax.block_until_ready(make_activation("sigmoid")(xb))
    refb = jax.nn.sigmoid(xb.astype(jnp.float32)).astype(jnp.bfloat16)
    if outb.shape != xb.shape or not jnp.allclose(
            outb.astype(jnp.float32), refb.astype(jnp.float32), atol=1e-2, rtol=1e-2):
        ok = False
        print("MISMATCH for bf16 sigmoid")

    if ok:
        print("KERNEL_OK")
</pallas_src>

<mosaic_0001>
module attributes {stable_mosaic.version = 11 : i64} {
  func.func @_activation_kernel(%arg0: i32, %arg1: memref<4x512xf32, #tpu.memory_space<vmem>>, %arg2: memref<4x512xf32, #tpu.memory_space<vmem>>) attributes {dimension_semantics = [#tpu.dimension_semantics<parallel>], iteration_bounds = array<i64: 1>, scalar_prefetch = 0 : i64, scratch_operands = 0 : i64, tpu.core_type = #tpu.core_type<tc>, window_params = [{transform_indices = @transform_0, window_bounds = array<i64: 4, 512>}, {transform_indices = @transform_1, window_bounds = array<i64: 4, 512>}]} {
    %c0 = arith.constant 0 : index
    %c0_0 = arith.constant 0 : index
    %0 = vector.load %arg1[%c0, %c0_0] : memref<4x512xf32, #tpu.memory_space<vmem>>, vector<4x512xf32>
    %cst = arith.constant 0.000000e+00 : f32
    %1 = vector.broadcast %cst : f32 to vector<4x512xf32>
    %2 = arith.maximumf %0, %1 : vector<4x512xf32>
    %c0_1 = arith.constant 0 : index
    %c0_2 = arith.constant 0 : index
    %3 = vector.load %arg2[%c0_1, %c0_2] : memref<4x512xf32, #tpu.memory_space<vmem>>, vector<4x512xf32>
    tpu.vector_store %arg2[%c0_1, %c0_2], %2 {strides = array<i32>} : memref<4x512xf32, #tpu.memory_space<vmem>>, vector<4x512xf32>,
    return
  }
  func.func @transform_0(%arg0: i32) -> (i32, i32) {
    %c0_i32 = arith.constant 0 : i32
    %c0_i32_0 = arith.constant 0 : i32
    return %arg0, %c0_i32 : i32, i32
  }
  func.func @transform_1(%arg0: i32) -> (i32, i32) {
    %c0_i32 = arith.constant 0 : i32
    %c0_i32_0 = arith.constant 0 : i32
    return %arg0, %c0_i32 : i32, i32
  }
}

</mosaic_0001>

<llo_original>
// kernel: tpu_custom_call.1
$region0: #{tpu_custom_call.1}
  #allocation0 [shape = 'u32[]', space=smem, size = 0x4, offset = 0x4, fixed_abs, tag = 'smem constant byte address 0x4 - core index']
  #allocation1 [shape = 'u32[144,128]{1,0:T(1,128)}', space=vmem, size = 0x12000, scoped, tag = 'internal scratch']
  %s0 = inlined_call_operand.hbm [shape: f32[4,512], index: 0, kind: input, shape index: {}]
  %s1 = inlined_call_operand.hbm [shape: f32[4,512], index: 1, kind: output, shape index: {}]
  %s2 = sld [smem:[#allocation0]]
  $region18: #{tpu_custom_call.1} parent=0
    _
  %s4 = ssub.s32 1, %s2
  %s5 = scalar_select 0, %s4, %s2
  $region1: #{tpu_custom_call.1} parent=0
    #allocation2 [shape = 'u8[8192]{0}', space=vmem, size = 0x2000, scoped, tag = 'input window, operand 0, single buffered']
    #allocation3 [shape = 's32[1]{0}', space=sflag, size = 0x4, scoped, tag = 'scoped memory for tpu_custom_call.1']
    #allocation4 [shape = 's32[1]{0}', space=sflag, size = 0x4, scoped, tag = 'scoped memory for tpu_custom_call.1']
    #allocation5 [shape = 'u8[8192]{0}', space=vmem, size = 0x2000, scoped, tag = 'output window, operand 0, single buffered']
    %6 = vsyncpa [#allocation3], 0
    %7 = vsyncpa [#allocation4], 0
    // Predicated region
    $region2: #{tpu_custom_call.1} parent=1 // pred_check
      _
    $region3: #{tpu_custom_call.1} parent=1 // pred_check_branch
      %9 = sbr.rel (0) target = $region5
    $region4: #{tpu_custom_call.1} parent=1 // pred_region
      %s11 = ssub.s32 256, 256
      %12 = vsyncadd [#allocation3], %s11
      %s14 = sshll.u32 [#allocation2], 4
      %s15 = int_to_ptr.vmem [resolvable:$true] %s14
      %17 = dma.hbm_to_vmem [thread:$0]  %s0, 256, %s15, [#allocation3]
    $region5: #{tpu_custom_call.1} parent=1 // pred_fallthru
      _
    // Predicated region
    $region6: #{tpu_custom_call.1} parent=1 // pred_check
      _
    $region7: #{tpu_custom_call.1} parent=1 // pred_check_branch
      %19 = sbr.rel (0) target = $region9
    $region8: #{tpu_custom_call.1} parent=1 // pred_region
      %20 = dma.done [#allocation3], 256
    $region9: #{tpu_custom_call.1} parent=1 // pred_fallthru
      _
    %v21 = vld [vmem:[#allocation2] sm:$0xff]
    %v22 = vld [vmem:[#allocation2 + $0x8] sm:$0xff]
    %v23 = vmax.f32 %v21, 0.0
    %v24 = vmax.f32 %v22, 0.0
    %25 = vst [vmem:[#allocation5] sm:$0xff] %v23
    %26 = vst [vmem:[#allocation5 + $0x8] sm:$0xff] %v24
    // Predicated region
    $region10: #{tpu_custom_call.1} parent=1 // pred_check
      _
    $region11: #{tpu_custom_call.1} parent=1 // pred_check_branch
      %28 = sbr.rel (0) target = $region13
    $region12: #{tpu_custom_call.1} parent=1 // pred_region
      %s30 = ssub.s32 256, 256
      %31 = vsyncadd [#allocation4], %s30
      %s33 = sshll.u32 [#allocation5], 4
      %s34 = int_to_ptr.vmem [resolvable:$true] %s33
      %36 = dma.vmem_to_hbm [thread:$0]  %s34, 256, %s1, [#allocation4]
    $region13: #{tpu_custom_call.1} parent=1 // pred_fallthru
      _
    // Predicated region
    $region14: #{tpu_custom_call.1} parent=1 // pred_check
      _
    $region15: #{tpu_custom_call.1} parent=1 // pred_check_branch
      %38 = sbr.rel (0) target = $region17
    $region16: #{tpu_custom_call.1} parent=1 // pred_region
      %39 = dma.done [#allocation4], 256
    $region17: #{tpu_custom_call.1} parent=1 // pred_fallthru
      _
    %40 = vsyncpa [#allocation3], 1
    %41 = vsyncpa [#allocation4], 1

</llo_original>
